<compile_context>
chip_gen: v7x
topology: tpu7x:2x2x1
jax: 0.10.0
libtpu: 0.0.40
codegen_flags: <defaults>
</compile_context>

<pallas_src>
import jax
import jax.numpy as jnp
from jax.experimental import pallas as pl
from jax.experimental.pallas import tpu as pltpu

BN_EPS = 1e-5


# --------------------------------------------------------------------------------------
# Kernel
# --------------------------------------------------------------------------------------
def _make_kernel(n_layers: int, class_counts: tuple, total_hid: int,
                 total_cls: int, n_tasks: int, out_pad: int):
    """Kernel closed over the static network structure.

    Refs (in order): x, (W_l, b_l) * n_layers, W1c, b1c, W2blk, b2c, out_slab
    """
    out_width = 2 * total_cls + n_tasks

    def kernel(*refs):
        out_ref = refs[-1]
        h = refs[0][...]                            # bf16 [TB, d_in] (cast on host)

        # ---- shared trunk: Linear(+folded BN of previous layer) -> ReLU, bf16 carry
        idx = 1
        for _ in range(n_layers):
            w = refs[idx][...]                      # bf16 [in, out]
            b = refs[idx + 1][...]                  # f32  [1,  out]
            idx += 2
            a = jnp.dot(h, w, preferred_element_type=jnp.float32) + b
            h = jnp.maximum(a, 0.0).astype(jnp.bfloat16)

        w1c = refs[idx][...]                        # bf16 [head_in, total_hid + n_tasks]
        b1c = refs[idx + 1][...]                    # f32  [1, total_hid + n_tasks]
        w2b = refs[idx + 2][...]                    # bf16 [total_hid, total_cls] (block-diag)
        b2c = refs[idx + 3][...]                    # f32  [1, total_cls]

        # ---- fused head-1 + confidence matmul (last shared BN already folded in)
        f1 = jnp.dot(h, w1c, preferred_element_type=jnp.float32) + b1c
        z = jnp.maximum(f1[:, :total_hid], 0.0).astype(jnp.bfloat16)
        conf_pre = f1[:, total_hid:total_hid + n_tasks]

        # ---- fused (block-diagonal) head-2 matmul -> all task logits at once
        # NOTE(v6e/v7x): zero blocks are free while total_hid/total_cls stay within a
        # couple of 256-wide MXU tiles; revisit (per-task dots) for very large task counts.
        logits = jnp.dot(z, w2b, preferred_element_type=jnp.float32) + b2c   # f32 [TB, total_cls]

        # ---- per-task softmax as a segment-masked softmax over the full width
        # (full-width selects/reductions instead of lane-unaligned per-task slices)
        col = jax.lax.broadcasted_iota(jnp.int32, (1, total_cls), 1)
        m_full = jnp.zeros_like(logits)
        off = 0
        for n in class_counts:
            seg = (col >= off) & (col < off + n)
            m_t = jnp.max(jnp.where(seg, logits, -jnp.inf), axis=-1, keepdims=True)
            m_full = jnp.where(seg, m_t, m_full)
            off += n
        e = jnp.exp(logits - m_full)
        d_full = jnp.ones_like(logits)
        off = 0
        for n in class_counts:
            seg = (col >= off) & (col < off + n)
            s_t = jnp.sum(jnp.where(seg, e, 0.0), axis=-1, keepdims=True)
            d_full = jnp.where(seg, s_t, d_full)
            off += n
        probs = e * pl.reciprocal(d_full, approx=False)     # exact: strict simplex

        # ---- confidence: exact sigmoid (stays in [0, 1])
        conf = pl.reciprocal(1.0 + jnp.exp(-conf_pre), approx=False)

        # ---- single lane-dense output slab (3 aligned pieces + pad), bf16 writeback
        parts = [logits, probs, conf]
        pad = out_pad - out_width
        if pad > 0:
            parts.append(jnp.zeros((logits.shape[0], pad), jnp.float32))
        out_ref[...] = jnp.concatenate(parts, axis=-1).astype(out_ref.dtype)

    return kernel


# --------------------------------------------------------------------------------------
# Host-side parameter folding / fusion  (call ONCE per model, reuse the result)
# --------------------------------------------------------------------------------------
def fold_params(params, num_classes):
    """Fold eval-mode BN into the following Linear; fuse head weights.

    Weights are static per model: fold once and reuse across forward calls so this
    prep is not re-executed as separate XLA ops on every inference step.
    """
    task_names = list(num_classes.keys())
    class_counts = [num_classes[t] for t in task_names]

    flat = []
    s_prev = None  # BN scale of previous layer (folded forward)
    t_prev = None  # BN shift of previous layer

    for layer in params["shared"]:
        w = layer["w"].astype(jnp.float32)
        b = layer["b"].astype(jnp.float32)
        if s_prev is not None:
            b = b + t_prev[None, :] @ w            # fold shift with ORIGINAL W
            w = s_prev[:, None] * w                # then scale rows
        flat.append(w.astype(jnp.bfloat16))
        flat.append(b)
        s = layer["gamma"][0] * jax.lax.rsqrt(layer["rvar"][0] + BN_EPS)
        t = layer["beta"][0] - layer["rmean"][0] * s
        s_prev, t_prev = s, t

    # fuse head first layers + confidence head along the output dim
    w1_list = [params["heads"][t]["w1"] for t in task_names] + [params["confidence"]["w"]]
    b1_list = [params["heads"][t]["b1"] for t in task_names] + [params["confidence"]["b"]]
    w1c = jnp.concatenate([w.astype(jnp.float32) for w in w1_list], axis=1)
    b1c = jnp.concatenate([b.astype(jnp.float32) for b in b1_list], axis=1)
    if s_prev is not None:                         # fold last shared BN
        b1c = b1c + t_prev[None, :] @ w1c
        w1c = s_prev[:, None] * w1c

    # block-diagonal fused head second layers
    head_hid = params["heads"][task_names[0]]["w1"].shape[1]
    total_hid = len(task_names) * head_hid
    total_cls = sum(class_counts)
    w2b = jnp.zeros((total_hid, total_cls), jnp.float32)
    b2_parts = []
    r = c = 0
    for t, n in zip(task_names, class_counts):
        w2b = w2b.at[r:r + head_hid, c:c + n].set(params["heads"][t]["w2"].astype(jnp.float32))
        b2_parts.append(params["heads"][t]["b2"].astype(jnp.float32))
        r += head_hid
        c += n
    b2c = jnp.concatenate(b2_parts, axis=1)

    flat += [w1c.astype(jnp.bfloat16), b1c, w2b.astype(jnp.bfloat16), b2c]
    return flat, tuple(class_counts), total_hid, total_cls, len(params["shared"])


# --------------------------------------------------------------------------------------
# Parameter init (PyTorch-style, unchanged semantics)
# --------------------------------------------------------------------------------------
def init_params(key, input_dim, hidden_dims, num_classes):
    def linear(k, fan_in, fan_out):
        kw, kb = jax.random.split(k)
        bound = 1.0 / float(fan_in) ** 0.5
        w = jax.random.uniform(kw, (fan_in, fan_out), jnp.float32, -bound, bound)
        b = jax.random.uniform(kb, (1, fan_out), jnp.float32, -bound, bound)
        return w, b

    n_keys = len(hidden_dims) + 2 * len(num_classes) + 1
    keys = iter(jax.random.split(key, n_keys))

    params = {"shared": [], "heads": {}, "confidence": {}}
    prev = input_dim
    for hdim in hidden_dims:
        w, b = linear(next(keys), prev, hdim)
        params["shared"].append({
            "w": w, "b": b,
            "gamma": jnp.ones((1, hdim), jnp.float32),
            "beta": jnp.zeros((1, hdim), jnp.float32),
            "rmean": jnp.zeros((1, hdim), jnp.float32),
            "rvar": jnp.ones((1, hdim), jnp.float32),
        })
        prev = hdim

    head_in = hidden_dims[-1]
    head_hid = head_in // 2
    for task_name, n_cls in num_classes.items():
        w1, b1 = linear(next(keys), head_in, head_hid)
        w2, b2 = linear(next(keys), head_hid, n_cls)
        params["heads"][task_name] = {"w1": w1, "b1": b1, "w2": w2, "b2": b2}

    wc, bc = linear(next(keys), head_in, len(num_classes))
    params["confidence"] = {"w": wc, "b": bc}
    return params


# --------------------------------------------------------------------------------------
# Forward wrapper
# --------------------------------------------------------------------------------------
def _choose_batch_tile(B):
    """Batch tile: >=2 grid steps when possible (v7x megacore), cap 1024, multiple of 8."""
    if B <= 8:
        return 8
    tb = ((B + 1) // 2 + 7) // 8 * 8
    return min(tb, 1024)


def classification_forward(x, params_or_folded, num_classes):
    task_names = list(num_classes.keys())
    n_tasks = len(task_names)

    if isinstance(params_or_folded, dict) and "shared" in params_or_folded:
        folded = fold_params(params_or_folded, num_classes)   # prefer folding once outside
    else:
        folded = params_or_folded
    flat, class_counts, total_hid, total_cls, n_layers = folded

    B, d_in = x.shape
    TB = _choose_batch_tile(B)
    B_pad = ((B + TB - 1) // TB) * TB

    # bf16 input stream: halves the x HBM->VMEM DMA (kernel computes in bf16 anyway)
    x = x.astype(jnp.bfloat16)
    if B_pad != B:
        x = jnp.pad(x, ((0, B_pad - B), (0, 0)))

    out_width = 2 * total_cls + n_tasks
    OUT_PAD = max(128, ((out_width + 127) // 128) * 128)

    kernel = _make_kernel(n_layers, class_counts, total_hid, total_cls, n_tasks, OUT_PAD)

    # Footprint-derived, generation-aware VMEM limit (v7x has only 64 MiB physical).
    weight_bytes = sum(int(a.size) * a.dtype.itemsize for a in flat)
    tile_bytes = 2 * (TB * d_in * 2) + 2 * (TB * OUT_PAD * 2)   # double-buffered bf16 tiles
    needed = 2 * weight_bytes + tile_bytes + (4 << 20)          # headroom + worst-case buffering
    try:
        phys_vmem = int(pltpu.get_tpu_info().vmem_capacity_bytes)
    except Exception:
        phys_vmem = 64 << 20
    vmem_limit = int(min(max(needed, 16 << 20), int(phys_vmem * 0.75)))

    x_spec = pl.BlockSpec((TB, d_in), lambda i: (i, 0))
    out_spec = pl.BlockSpec((TB, OUT_PAD), lambda i: (i, 0))

    def _call(single_buffer_weights):
        if single_buffer_weights:
            # constant index_map -> weights never need a second pipeline buffer
            w_specs = [pl.BlockSpec(a.shape, lambda i: (0, 0),
                                    pipeline_mode=pl.Buffered(1)) for a in flat]
        else:
            w_specs = [pl.BlockSpec(a.shape, lambda i: (0, 0)) for a in flat]
        fn = pl.pallas_call(
            kernel,
            grid=(B_pad // TB,),
            out_shape=jax.ShapeDtypeStruct((B_pad, OUT_PAD), jnp.bfloat16),
            in_specs=[x_spec] + w_specs,
            out_specs=out_spec,
            compiler_params=pltpu.CompilerParams(
                dimension_semantics=("parallel",),
                vmem_limit_bytes=vmem_limit,
            ),
        )
        return jax.block_until_ready(fn(x, *flat))

    try:
        slab = _call(True)       # single-buffered VMEM-resident weights
    except Exception:
        slab = _call(False)      # fallback if Buffered(1) is unsupported in this jax build

    # slice the lane-dense slab; cast the tiny per-task outputs back to f32 for parity
    predictions = {}
    off = 0
    for t, n in zip(task_names, class_counts):
        predictions[t] = {"logits": slab[:B, off:off + n].astype(jnp.float32)}
        off += n
    for t, n in zip(task_names, class_counts):
        predictions[t]["probabilities"] = slab[:B, off:off + n].astype(jnp.float32)
        off += n
    predictions["confidence"] = slab[:B, off:off + n_tasks].astype(jnp.float32)
    return predictions


# --------------------------------------------------------------------------------------
if __name__ == "__main__":
    key = jax.random.PRNGKey(0)
    kx, kp = jax.random.split(key)

    batch = 8
    input_dim = 32
    hidden_dims = [64, 32]
    num_classes = {"pattern": 5, "regime": 3}

    x = jax.random.normal(kx, (batch, input_dim), dtype=jnp.float32)
    params = init_params(kp, input_dim, hidden_dims, num_classes)

    folded = fold_params(params, num_classes)          # fold once per model, reuse
    preds = classification_forward(x, folded, num_classes)
    preds = jax.block_until_ready(preds)

    # sanity: shapes, probabilities ~sum to 1 (bf16 round of exact f32 softmax),
    # confidence in [0, 1], everything finite.
    for t in num_classes:
        assert preds[t]["logits"].shape == (batch, num_classes[t])
        assert preds[t]["probabilities"].shape == (batch, num_classes[t])
        s = jnp.sum(preds[t]["probabilities"], axis=-1)
        assert bool(jnp.all(jnp.abs(s - 1.0) < 1e-2))
        assert bool(jnp.all(jnp.isfinite(preds[t]["logits"])))
    conf = preds["confidence"]
    assert conf.shape == (batch, len(num_classes))
    assert bool(jnp.all(jnp.isfinite(conf)))
    assert bool(jnp.all((conf >= 0.0) & (conf <= 1.0)))

    print("KERNEL_OK")
</pallas_src>

<mosaic_0001>
module attributes {stable_mosaic.version = 11 : i64} {
  func.func @kernel(%arg0: i32, %arg1: memref<8x32xbf16, #tpu.memory_space<vmem>>, %arg2: memref<32x64xbf16, #tpu.memory_space<vmem>>, %arg3: memref<1x64xf32, #tpu.memory_space<vmem>>, %arg4: memref<64x32xbf16, #tpu.memory_space<vmem>>, %arg5: memref<1x32xf32, #tpu.memory_space<vmem>>, %arg6: memref<32x34xbf16, #tpu.memory_space<vmem>>, %arg7: memref<1x34xf32, #tpu.memory_space<vmem>>, %arg8: memref<32x8xbf16, #tpu.memory_space<vmem>>, %arg9: memref<1x8xf32, #tpu.memory_space<vmem>>, %arg10: memref<8x128xbf16, #tpu.memory_space<vmem>>) attributes {dimension_semantics = [#tpu.dimension_semantics<parallel>], iteration_bounds = array<i64: 1>, scalar_prefetch = 0 : i64, scratch_operands = 0 : i64, tpu.core_type = #tpu.core_type<tc>, window_params = [{transform_indices = @transform_0, window_bounds = array<i64: 8, 32>}, {pipeline_mode = #tpu.pipeline_mode<synchronous>, transform_indices = @transform_1, window_bounds = array<i64: 32, 64>}, {pipeline_mode = #tpu.pipeline_mode<synchronous>, transform_indices = @transform_2, window_bounds = array<i64: 1, 64>}, {pipeline_mode = #tpu.pipeline_mode<synchronous>, transform_indices = @transform_3, window_bounds = array<i64: 64, 32>}, {pipeline_mode = #tpu.pipeline_mode<synchronous>, transform_indices = @transform_4, window_bounds = array<i64: 1, 32>}, {pipeline_mode = #tpu.pipeline_mode<synchronous>, transform_indices = @transform_5, window_bounds = array<i64: 32, 34>}, {pipeline_mode = #tpu.pipeline_mode<synchronous>, transform_indices = @transform_6, window_bounds = array<i64: 1, 34>}, {pipeline_mode = #tpu.pipeline_mode<synchronous>, transform_indices = @transform_7, window_bounds = array<i64: 32, 8>}, {pipeline_mode = #tpu.pipeline_mode<synchronous>, transform_indices = @transform_8, window_bounds = array<i64: 1, 8>}, {transform_indices = @transform_9, window_bounds = array<i64: 8, 128>}]} {
    %c0 = arith.constant 0 : index
    %c0_0 = arith.constant 0 : index
    %0 = vector.load %arg1[%c0, %c0_0] : memref<8x32xbf16, #tpu.memory_space<vmem>>, vector<8x32xbf16>
    %c0_1 = arith.constant 0 : index
    %c0_2 = arith.constant 0 : index
    %1 = vector.load %arg2[%c0_1, %c0_2] : memref<32x64xbf16, #tpu.memory_space<vmem>>, vector<32x64xbf16>
    %c0_3 = arith.constant 0 : index
    %c0_4 = arith.constant 0 : index
    %2 = vector.load %arg3[%c0_3, %c0_4] : memref<1x64xf32, #tpu.memory_space<vmem>>, vector<1x64xf32>
    %cst = arith.constant dense<0.000000e+00> : vector<8x64xf32>
    %3 = tpu.matmul %0, %1, %cst {dimension_numbers = #tpu.dot_dimension_numbers<[1], [0], [0], [1], [0, 0, 1, 1], [], []>} : vector<8x32xbf16>, vector<32x64xbf16>, vector<8x64xf32> -> vector<8x64xf32>
    %4 = vector.broadcast %2 : vector<1x64xf32> to vector<8x64xf32>
    %5 = arith.addf %3, %4 : vector<8x64xf32>
    %cst_5 = arith.constant 0.000000e+00 : f32
    %6 = vector.broadcast %cst_5 : f32 to vector<8x64xf32>
    %7 = arith.maximumf %5, %6 : vector<8x64xf32>
    %8 = arith.truncf %7 : vector<8x64xf32> to vector<8x64xbf16>
    %c0_6 = arith.constant 0 : index
    %c0_7 = arith.constant 0 : index
    %9 = vector.load %arg4[%c0_6, %c0_7] : memref<64x32xbf16, #tpu.memory_space<vmem>>, vector<64x32xbf16>
    %c0_8 = arith.constant 0 : index
    %c0_9 = arith.constant 0 : index
    %10 = vector.load %arg5[%c0_8, %c0_9] : memref<1x32xf32, #tpu.memory_space<vmem>>, vector<1x32xf32>
    %cst_10 = arith.constant dense<0.000000e+00> : vector<8x32xf32>
    %11 = tpu.matmul %8, %9, %cst_10 {dimension_numbers = #tpu.dot_dimension_numbers<[1], [0], [0], [1], [0, 0, 1, 1], [], []>} : vector<8x64xbf16>, vector<64x32xbf16>, vector<8x32xf32> -> vector<8x32xf32>
    %12 = vector.broadcast %10 : vector<1x32xf32> to vector<8x32xf32>
    %13 = arith.addf %11, %12 : vector<8x32xf32>
    %cst_11 = arith.constant 0.000000e+00 : f32
    %14 = vector.broadcast %cst_11 : f32 to vector<8x32xf32>
    %15 = arith.maximumf %13, %14 : vector<8x32xf32>
    %16 = arith.truncf %15 : vector<8x32xf32> to vector<8x32xbf16>
    %c0_12 = arith.constant 0 : index
    %c0_13 = arith.constant 0 : index
    %17 = vector.load %arg6[%c0_12, %c0_13] : memref<32x34xbf16, #tpu.memory_space<vmem>>, vector<32x34xbf16>
    %c0_14 = arith.constant 0 : index
    %c0_15 = arith.constant 0 : index
    %18 = vector.load %arg7[%c0_14, %c0_15] : memref<1x34xf32, #tpu.memory_space<vmem>>, vector<1x34xf32>
    %c0_16 = arith.constant 0 : index
    %c0_17 = arith.constant 0 : index
    %19 = vector.load %arg8[%c0_16, %c0_17] : memref<32x8xbf16, #tpu.memory_space<vmem>>, vector<32x8xbf16>
    %c0_18 = arith.constant 0 : index
    %c0_19 = arith.constant 0 : index
    %20 = vector.load %arg9[%c0_18, %c0_19] : memref<1x8xf32, #tpu.memory_space<vmem>>, vector<1x8xf32>
    %cst_20 = arith.constant dense<0.000000e+00> : vector<8x34xf32>
    %21 = tpu.matmul %16, %17, %cst_20 {dimension_numbers = #tpu.dot_dimension_numbers<[1], [0], [0], [1], [0, 0, 1, 1], [], []>} : vector<8x32xbf16>, vector<32x34xbf16>, vector<8x34xf32> -> vector<8x34xf32>
    %22 = vector.broadcast %18 : vector<1x34xf32> to vector<8x34xf32>
    %23 = arith.addf %21, %22 : vector<8x34xf32>
    %24 = vector.extract_strided_slice %23 {offsets = [0, 0], sizes = [8, 32], strides = [1, 1]} : vector<8x34xf32> to vector<8x32xf32>
    %cst_21 = arith.constant 0.000000e+00 : f32
    %25 = vector.broadcast %cst_21 : f32 to vector<8x32xf32>
    %26 = arith.maximumf %24, %25 : vector<8x32xf32>
    %27 = arith.truncf %26 : vector<8x32xf32> to vector<8x32xbf16>
    %28 = vector.extract_strided_slice %23 {offsets = [0, 32], sizes = [8, 2], strides = [1, 1]} : vector<8x34xf32> to vector<8x2xf32>
    %cst_22 = arith.constant dense<0.000000e+00> : vector<8x8xf32>
    %29 = tpu.matmul %27, %19, %cst_22 {dimension_numbers = #tpu.dot_dimension_numbers<[1], [0], [0], [1], [0, 0, 1, 1], [], []>} : vector<8x32xbf16>, vector<32x8xbf16>, vector<8x8xf32> -> vector<8x8xf32>
    %30 = vector.broadcast %20 : vector<1x8xf32> to vector<8x8xf32>
    %31 = arith.addf %29, %30 : vector<8x8xf32>
    %32 = tpu.iota {dimensions = array<i32: 1>} : vector<1x8xi32>
    %cst_23 = arith.constant 0.000000e+00 : f32
    %33 = vector.broadcast %cst_23 : f32 to vector<8x8xf32>
    %c0_i32 = arith.constant 0 : i32
    %34 = vector.broadcast %c0_i32 : i32 to vector<1x8xi32>
    %35 = arith.cmpi sge, %32, %34 : vector<1x8xi32>
    %c5_i32 = arith.constant 5 : i32
    %36 = vector.broadcast %c5_i32 : i32 to vector<1x8xi32>
    %37 = arith.cmpi slt, %32, %36 : vector<1x8xi32>
    %38 = arith.andi %35, %37 : vector<1x8xi1>
    %cst_24 = arith.constant 0xFF800000 : f32
    %39 = vector.shape_cast %38 : vector<1x8xi1> to vector<1x8xi1>
    %40 = vector.broadcast %39 : vector<1x8xi1> to vector<8x8xi1>
    %41 = vector.broadcast %cst_24 : f32 to vector<8x8xf32>
    %42 = arith.select %40, %31, %41 : vector<8x8xi1>, vector<8x8xf32>
    %cst_25 = arith.constant dense<0xFF800000> : vector<8xf32>
    %43 = vector.multi_reduction <maximumf>, %42, %cst_25 [1] : vector<8x8xf32> to vector<8xf32>
    %44 = vector.shape_cast %43 : vector<8xf32> to vector<8x1xf32>
    %45 = vector.shape_cast %38 : vector<1x8xi1> to vector<1x8xi1>
    %46 = vector.broadcast %45 : vector<1x8xi1> to vector<8x8xi1>
    %47 = vector.shape_cast %44 : vector<8x1xf32> to vector<8x1xf32>
    %48 = vector.broadcast %47 : vector<8x1xf32> to vector<8x8xf32>
    %49 = arith.select %46, %48, %33 : vector<8x8xi1>, vector<8x8xf32>
    %c5_i32_26 = arith.constant 5 : i32
    %50 = vector.broadcast %c5_i32_26 : i32 to vector<1x8xi32>
    %51 = arith.cmpi sge, %32, %50 : vector<1x8xi32>
    %c8_i32 = arith.constant 8 : i32
    %52 = vector.broadcast %c8_i32 : i32 to vector<1x8xi32>
    %53 = arith.cmpi slt, %32, %52 : vector<1x8xi32>
    %54 = arith.andi %51, %53 : vector<1x8xi1>
    %cst_27 = arith.constant 0xFF800000 : f32
    %55 = vector.shape_cast %54 : vector<1x8xi1> to vector<1x8xi1>
    %56 = vector.broadcast %55 : vector<1x8xi1> to vector<8x8xi1>
    %57 = vector.broadcast %cst_27 : f32 to vector<8x8xf32>
    %58 = arith.select %56, %31, %57 : vector<8x8xi1>, vector<8x8xf32>
    %cst_28 = arith.constant dense<0xFF800000> : vector<8xf32>
    %59 = vector.multi_reduction <maximumf>, %58, %cst_28 [1] : vector<8x8xf32> to vector<8xf32>
    %60 = vector.shape_cast %59 : vector<8xf32> to vector<8x1xf32>
    %61 = vector.shape_cast %54 : vector<1x8xi1> to vector<1x8xi1>
    %62 = vector.broadcast %61 : vector<1x8xi1> to vector<8x8xi1>
    %63 = vector.shape_cast %60 : vector<8x1xf32> to vector<8x1xf32>
    %64 = vector.broadcast %63 : vector<8x1xf32> to vector<8x8xf32>
    %65 = arith.select %62, %64, %49 : vector<8x8xi1>, vector<8x8xf32>
    %66 = arith.subf %31, %65 : vector<8x8xf32>
    %67 = math.exp %66 : vector<8x8xf32>
    %cst_29 = arith.constant 1.000000e+00 : f32
    %68 = vector.broadcast %cst_29 : f32 to vector<8x8xf32>
    %c0_i32_30 = arith.constant 0 : i32
    %69 = vector.broadcast %c0_i32_30 : i32 to vector<1x8xi32>
    %70 = arith.cmpi sge, %32, %69 : vector<1x8xi32>
    %c5_i32_31 = arith.constant 5 : i32
    %71 = vector.broadcast %c5_i32_31 : i32 to vector<1x8xi32>
    %72 = arith.cmpi slt, %32, %71 : vector<1x8xi32>
    %73 = arith.andi %70, %72 : vector<1x8xi1>
    %cst_32 = arith.constant 0.000000e+00 : f32
    %74 = vector.shape_cast %73 : vector<1x8xi1> to vector<1x8xi1>
    %75 = vector.broadcast %74 : vector<1x8xi1> to vector<8x8xi1>
    %76 = vector.broadcast %cst_32 : f32 to vector<8x8xf32>
    %77 = arith.select %75, %67, %76 : vector<8x8xi1>, vector<8x8xf32>
    %cst_33 = arith.constant dense<0.000000e+00> : vector<8xf32>
    %78 = vector.multi_reduction <add>, %77, %cst_33 [1] : vector<8x8xf32> to vector<8xf32>
    %79 = vector.shape_cast %78 : vector<8xf32> to vector<8x1xf32>
    %80 = vector.shape_cast %73 : vector<1x8xi1> to vector<1x8xi1>
    %81 = vector.broadcast %80 : vector<1x8xi1> to vector<8x8xi1>
    %82 = vector.shape_cast %79 : vector<8x1xf32> to vector<8x1xf32>
    %83 = vector.broadcast %82 : vector<8x1xf32> to vector<8x8xf32>
    %84 = arith.select %81, %83, %68 : vector<8x8xi1>, vector<8x8xf32>
    %c5_i32_34 = arith.constant 5 : i32
    %85 = vector.broadcast %c5_i32_34 : i32 to vector<1x8xi32>
    %86 = arith.cmpi sge, %32, %85 : vector<1x8xi32>
    %c8_i32_35 = arith.constant 8 : i32
    %87 = vector.broadcast %c8_i32_35 : i32 to vector<1x8xi32>
    %88 = arith.cmpi slt, %32, %87 : vector<1x8xi32>
    %89 = arith.andi %86, %88 : vector<1x8xi1>
    %cst_36 = arith.constant 0.000000e+00 : f32
    %90 = vector.shape_cast %89 : vector<1x8xi1> to vector<1x8xi1>
    %91 = vector.broadcast %90 : vector<1x8xi1> to vector<8x8xi1>
    %92 = vector.broadcast %cst_36 : f32 to vector<8x8xf32>
    %93 = arith.select %91, %67, %92 : vector<8x8xi1>, vector<8x8xf32>
    %cst_37 = arith.constant dense<0.000000e+00> : vector<8xf32>
    %94 = vector.multi_reduction <add>, %93, %cst_37 [1] : vector<8x8xf32> to vector<8xf32>
    %95 = vector.shape_cast %94 : vector<8xf32> to vector<8x1xf32>
    %96 = vector.shape_cast %89 : vector<1x8xi1> to vector<1x8xi1>
    %97 = vector.broadcast %96 : vector<1x8xi1> to vector<8x8xi1>
    %98 = vector.shape_cast %95 : vector<8x1xf32> to vector<8x1xf32>
    %99 = vector.broadcast %98 : vector<8x1xf32> to vector<8x8xf32>
    %100 = arith.select %97, %99, %84 : vector<8x8xi1>, vector<8x8xf32>
    %101 = tpu.reciprocal %100 : vector<8x8xf32> -> vector<8x8xf32>
    %102 = arith.mulf %67, %101 : vector<8x8xf32>
    %cst_38 = arith.constant 0.000000e+00 : f32
    %103 = vector.broadcast %cst_38 : f32 to vector<8x2xf32>
    %104 = arith.subf %103, %28 : vector<8x2xf32>
    %105 = math.exp %104 : vector<8x2xf32>
    %cst_39 = arith.constant 1.000000e+00 : f32
    %106 = vector.broadcast %cst_39 : f32 to vector<8x2xf32>
    %107 = arith.addf %106, %105 : vector<8x2xf32>
    %108 = tpu.reciprocal %107 : vector<8x2xf32> -> vector<8x2xf32>
    %cst_40 = arith.constant 0.000000e+00 : f32
    %109 = vector.broadcast %cst_40 : f32 to vector<8x110xf32>
    %110 = tpu.concatenate %31, %102, %108, %109 in 1 : vector<8x8xf32>, vector<8x8xf32>, vector<8x2xf32>, vector<8x110xf32> -> vector<8x128xf32>
    %111 = arith.truncf %110 : vector<8x128xf32> to vector<8x128xbf16>
    %c0_41 = arith.constant 0 : index
    %c0_42 = arith.constant 0 : index
    %112 = vector.load %arg10[%c0_41, %c0_42] : memref<8x128xbf16, #tpu.memory_space<vmem>>, vector<8x128xbf16>
    tpu.vector_store %arg10[%c0_41, %c0_42], %111 {strides = array<i32>} : memref<8x128xbf16, #tpu.memory_space<vmem>>, vector<8x128xbf16>,
    return
  }
  func.func @transform_0(%arg0: i32) -> (i32, i32) {
    %c0_i32 = arith.constant 0 : i32
    %c0_i32_0 = arith.constant 0 : i32
    return %arg0, %c0_i32 : i32, i32
  }
  func.func @transform_1(%arg0: i32) -> (i32, i32) {
    %c0_i32 = arith.constant 0 : i32
    %c0_i32_0 = arith.constant 0 : i32
    %c0_i32_1 = arith.constant 0 : i32
    return %c0_i32, %c0_i32_0 : i32, i32
  }
  func.func @transform_2(%arg0: i32) -> (i32, i32) {
    %c0_i32 = arith.constant 0 : i32
    %c0_i32_0 = arith.constant 0 : i32
    %c0_i32_1 = arith.constant 0 : i32
    return %c0_i32, %c0_i32_0 : i32, i32
  }
  func.func @transform_3(%arg0: i32) -> (i32, i32) {
    %c0_i32 = arith.constant 0 : i32
    %c0_i32_0 = arith.constant 0 : i32
    %c0_i32_1 = arith.constant 0 : i32
    return %c0_i32, %c0_i32_0 : i32, i32
  }
  func.func @transform_4(%arg0: i32) -> (i32, i32) {
    %c0_i32 = arith.constant 0 : i32
    %c0_i32_0 = arith.constant 0 : i32
    %c0_i32_1 = arith.constant 0 : i32
    return %c0_i32, %c0_i32_0 : i32, i32
  }
  func.func @transform_5(%arg0: i32) -> (i32, i32) {
    %c0_i32 = arith.constant 0 : i32
    %c0_i32_0 = arith.constant 0 : i32
    %c0_i32_1 = arith.constant 0 : i32
    return %c0_i32, %c0_i32_0 : i32, i32
  }
  func.func @transform_6(%arg0: i32) -> (i32, i32) {
    %c0_i32 = arith.constant 0 : i32
    %c0_i32_0 = arith.constant 0 : i32
    %c0_i32_1 = arith.constant 0 : i32
    return %c0_i32, %c0_i32_0 : i32, i32
  }
  func.func @transform_7(%arg0: i32) -> (i32, i32) {
    %c0_i32 = arith.constant 0 : i32
    %c0_i32_0 = arith.constant 0 : i32
    %c0_i32_1 = arith.constant 0 : i32
    return %c0_i32, %c0_i32_0 : i32, i32
  }
  func.func @transform_8(%arg0: i32) -> (i32, i32) {
    %c0_i32 = arith.constant 0 : i32
    %c0_i32_0 = arith.constant 0 : i32
    %c0_i32_1 = arith.constant 0 : i32
    return %c0_i32, %c0_i32_0 : i32, i32
  }
  func.func @transform_9(%arg0: i32) -> (i32, i32) {
    %c0_i32 = arith.constant 0 : i32
    %c0_i32_0 = arith.constant 0 : i32
    return %arg0, %c0_i32 : i32, i32
  }
}

module attributes {stable_mosaic.version = 11 : i64} {
  func.func @kernel(%arg0: i32, %arg1: memref<8x32xbf16, #tpu.memory_space<vmem>>, %arg2: memref<32x64xbf16, #tpu.memory_space<vmem>>, %arg3: memref<1x64xf32, #tpu.memory_space<vmem>>, %arg4: memref<64x32xbf16, #tpu.memory_space<vmem>>, %arg5: memref<1x32xf32, #tpu.memory_space<vmem>>, %arg6: memref<32x34xbf16, #tpu.memory_space<vmem>>, %arg7: memref<1x34xf32, #tpu.memory_space<vmem>>, %arg8: memref<32x8xbf16, #tpu.memory_space<vmem>>, %arg9: memref<1x8xf32, #tpu.memory_space<vmem>>, %arg10: memref<8x128xbf16, #tpu.memory_space<vmem>>) attributes {dimension_semantics = [#tpu.dimension_semantics<parallel>], iteration_bounds = array<i64: 1>, scalar_prefetch = 0 : i64, scratch_operands = 0 : i64, tpu.core_type = #tpu.core_type<tc>, window_params = [{transform_indices = @transform_0, window_bounds = array<i64: 8, 32>}, {pipeline_mode = #tpu.pipeline_mode<synchronous>, transform_indices = @transform_1, window_bounds = array<i64: 32, 64>}, {pipeline_mode = #tpu.pipeline_mode<synchronous>, transform_indices = @transform_2, window_bounds = array<i64: 1, 64>}, {pipeline_mode = #tpu.pipeline_mode<synchronous>, transform_indices = @transform_3, window_bounds = array<i64: 64, 32>}, {pipeline_mode = #tpu.pipeline_mode<synchronous>, transform_indices = @transform_4, window_bounds = array<i64: 1, 32>}, {pipeline_mode = #tpu.pipeline_mode<synchronous>, transform_indices = @transform_5, window_bounds = array<i64: 32, 34>}, {pipeline_mode = #tpu.pipeline_mode<synchronous>, transform_indices = @transform_6, window_bounds = array<i64: 1, 34>}, {pipeline_mode = #tpu.pipeline_mode<synchronous>, transform_indices = @transform_7, window_bounds = array<i64: 32, 8>}, {pipeline_mode = #tpu.pipeline_mode<synchronous>, transform_indices = @transform_8, window_bounds = array<i64: 1, 8>}, {transform_indices = @transform_9, window_bounds = array<i64: 8, 128>}]} {
    %c0 = arith.constant 0 : index
    %c0_0 = arith.constant 0 : index
    %0 = vector.load %arg1[%c0, %c0_0] : memref<8x32xbf16, #tpu.memory_space<vmem>>, vector<8x32xbf16>
    %c0_1 = arith.constant 0 : index
    %c0_2 = arith.constant 0 : index
    %1 = vector.load %arg2[%c0_1, %c0_2] : memref<32x64xbf16, #tpu.memory_space<vmem>>, vector<32x64xbf16>
    %c0_3 = arith.constant 0 : index
    %c0_4 = arith.constant 0 : index
    %2 = vector.load %arg3[%c0_3, %c0_4] : memref<1x64xf32, #tpu.memory_space<vmem>>, vector<1x64xf32>
    %cst = arith.constant dense<0.000000e+00> : vector<8x64xf32>
    %3 = tpu.matmul %0, %1, %cst {dimension_numbers = #tpu.dot_dimension_numbers<[1], [0], [0], [1], [0, 0, 1, 1], [], []>} : vector<8x32xbf16>, vector<32x64xbf16>, vector<8x64xf32> -> vector<8x64xf32>
    %4 = vector.broadcast %2 : vector<1x64xf32> to vector<8x64xf32>
    %5 = arith.addf %3, %4 : vector<8x64xf32>
    %cst_5 = arith.constant 0.000000e+00 : f32
    %6 = vector.broadcast %cst_5 : f32 to vector<8x64xf32>
    %7 = arith.maximumf %5, %6 : vector<8x64xf32>
    %8 = arith.truncf %7 : vector<8x64xf32> to vector<8x64xbf16>
    %c0_6 = arith.constant 0 : index
    %c0_7 = arith.constant 0 : index
    %9 = vector.load %arg4[%c0_6, %c0_7] : memref<64x32xbf16, #tpu.memory_space<vmem>>, vector<64x32xbf16>
    %c0_8 = arith.constant 0 : index
    %c0_9 = arith.constant 0 : index
    %10 = vector.load %arg5[%c0_8, %c0_9] : memref<1x32xf32, #tpu.memory_space<vmem>>, vector<1x32xf32>
    %cst_10 = arith.constant dense<0.000000e+00> : vector<8x32xf32>
    %11 = tpu.matmul %8, %9, %cst_10 {dimension_numbers = #tpu.dot_dimension_numbers<[1], [0], [0], [1], [0, 0, 1, 1], [], []>} : vector<8x64xbf16>, vector<64x32xbf16>, vector<8x32xf32> -> vector<8x32xf32>
    %12 = vector.broadcast %10 : vector<1x32xf32> to vector<8x32xf32>
    %13 = arith.addf %11, %12 : vector<8x32xf32>
    %cst_11 = arith.constant 0.000000e+00 : f32
    %14 = vector.broadcast %cst_11 : f32 to vector<8x32xf32>
    %15 = arith.maximumf %13, %14 : vector<8x32xf32>
    %16 = arith.truncf %15 : vector<8x32xf32> to vector<8x32xbf16>
    %c0_12 = arith.constant 0 : index
    %c0_13 = arith.constant 0 : index
    %17 = vector.load %arg6[%c0_12, %c0_13] : memref<32x34xbf16, #tpu.memory_space<vmem>>, vector<32x34xbf16>
    %c0_14 = arith.constant 0 : index
    %c0_15 = arith.constant 0 : index
    %18 = vector.load %arg7[%c0_14, %c0_15] : memref<1x34xf32, #tpu.memory_space<vmem>>, vector<1x34xf32>
    %c0_16 = arith.constant 0 : index
    %c0_17 = arith.constant 0 : index
    %19 = vector.load %arg8[%c0_16, %c0_17] : memref<32x8xbf16, #tpu.memory_space<vmem>>, vector<32x8xbf16>
    %c0_18 = arith.constant 0 : index
    %c0_19 = arith.constant 0 : index
    %20 = vector.load %arg9[%c0_18, %c0_19] : memref<1x8xf32, #tpu.memory_space<vmem>>, vector<1x8xf32>
    %cst_20 = arith.constant dense<0.000000e+00> : vector<8x34xf32>
    %21 = tpu.matmul %16, %17, %cst_20 {dimension_numbers = #tpu.dot_dimension_numbers<[1], [0], [0], [1], [0, 0, 1, 1], [], []>} : vector<8x32xbf16>, vector<32x34xbf16>, vector<8x34xf32> -> vector<8x34xf32>
    %22 = vector.broadcast %18 : vector<1x34xf32> to vector<8x34xf32>
    %23 = arith.addf %21, %22 : vector<8x34xf32>
    %24 = vector.extract_strided_slice %23 {offsets = [0, 0], sizes = [8, 32], strides = [1, 1]} : vector<8x34xf32> to vector<8x32xf32>
    %cst_21 = arith.constant 0.000000e+00 : f32
    %25 = vector.broadcast %cst_21 : f32 to vector<8x32xf32>
    %26 = arith.maximumf %24, %25 : vector<8x32xf32>
    %27 = arith.truncf %26 : vector<8x32xf32> to vector<8x32xbf16>
    %28 = vector.extract_strided_slice %23 {offsets = [0, 32], sizes = [8, 2], strides = [1, 1]} : vector<8x34xf32> to vector<8x2xf32>
    %cst_22 = arith.constant dense<0.000000e+00> : vector<8x8xf32>
    %29 = tpu.matmul %27, %19, %cst_22 {dimension_numbers = #tpu.dot_dimension_numbers<[1], [0], [0], [1], [0, 0, 1, 1], [], []>} : vector<8x32xbf16>, vector<32x8xbf16>, vector<8x8xf32> -> vector<8x8xf32>
    %30 = vector.broadcast %20 : vector<1x8xf32> to vector<8x8xf32>
    %31 = arith.addf %29, %30 : vector<8x8xf32>
    %32 = tpu.iota {dimensions = array<i32: 1>} : vector<1x8xi32>
    %cst_23 = arith.constant 0.000000e+00 : f32
    %33 = vector.broadcast %cst_23 : f32 to vector<8x8xf32>
    %c0_i32 = arith.constant 0 : i32
    %34 = vector.broadcast %c0_i32 : i32 to vector<1x8xi32>
    %35 = arith.cmpi sge, %32, %34 : vector<1x8xi32>
    %c5_i32 = arith.constant 5 : i32
    %36 = vector.broadcast %c5_i32 : i32 to vector<1x8xi32>
    %37 = arith.cmpi slt, %32, %36 : vector<1x8xi32>
    %38 = arith.andi %35, %37 : vector<1x8xi1>
    %cst_24 = arith.constant 0xFF800000 : f32
    %39 = vector.shape_cast %38 : vector<1x8xi1> to vector<1x8xi1>
    %40 = vector.broadcast %39 : vector<1x8xi1> to vector<8x8xi1>
    %41 = vector.broadcast %cst_24 : f32 to vector<8x8xf32>
    %42 = arith.select %40, %31, %41 : vector<8x8xi1>, vector<8x8xf32>
    %cst_25 = arith.constant dense<0xFF800000> : vector<8xf32>
    %43 = vector.multi_reduction <maximumf>, %42, %cst_25 [1] : vector<8x8xf32> to vector<8xf32>
    %44 = vector.shape_cast %43 : vector<8xf32> to vector<8x1xf32>
    %45 = vector.shape_cast %38 : vector<1x8xi1> to vector<1x8xi1>
    %46 = vector.broadcast %45 : vector<1x8xi1> to vector<8x8xi1>
    %47 = vector.shape_cast %44 : vector<8x1xf32> to vector<8x1xf32>
    %48 = vector.broadcast %47 : vector<8x1xf32> to vector<8x8xf32>
    %49 = arith.select %46, %48, %33 : vector<8x8xi1>, vector<8x8xf32>
    %c5_i32_26 = arith.constant 5 : i32
    %50 = vector.broadcast %c5_i32_26 : i32 to vector<1x8xi32>
    %51 = arith.cmpi sge, %32, %50 : vector<1x8xi32>
    %c8_i32 = arith.constant 8 : i32
    %52 = vector.broadcast %c8_i32 : i32 to vector<1x8xi32>
    %53 = arith.cmpi slt, %32, %52 : vector<1x8xi32>
    %54 = arith.andi %51, %53 : vector<1x8xi1>
    %cst_27 = arith.constant 0xFF800000 : f32
    %55 = vector.shape_cast %54 : vector<1x8xi1> to vector<1x8xi1>
    %56 = vector.broadcast %55 : vector<1x8xi1> to vector<8x8xi1>
    %57 = vector.broadcast %cst_27 : f32 to vector<8x8xf32>
    %58 = arith.select %56, %31, %57 : vector<8x8xi1>, vector<8x8xf32>
    %cst_28 = arith.constant dense<0xFF800000> : vector<8xf32>
    %59 = vector.multi_reduction <maximumf>, %58, %cst_28 [1] : vector<8x8xf32> to vector<8xf32>
    %60 = vector.shape_cast %59 : vector<8xf32> to vector<8x1xf32>
    %61 = vector.shape_cast %54 : vector<1x8xi1> to vector<1x8xi1>
    %62 = vector.broadcast %61 : vector<1x8xi1> to vector<8x8xi1>
    %63 = vector.shape_cast %60 : vector<8x1xf32> to vector<8x1xf32>
    %64 = vector.broadcast %63 : vector<8x1xf32> to vector<8x8xf32>
    %65 = arith.select %62, %64, %49 : vector<8x8xi1>, vector<8x8xf32>
    %66 = arith.subf %31, %65 : vector<8x8xf32>
    %67 = math.exp %66 : vector<8x8xf32>
    %cst_29 = arith.constant 1.000000e+00 : f32
    %68 = vector.broadcast %cst_29 : f32 to vector<8x8xf32>
    %c0_i32_30 = arith.constant 0 : i32
    %69 = vector.broadcast %c0_i32_30 : i32 to vector<1x8xi32>
    %70 = arith.cmpi sge, %32, %69 : vector<1x8xi32>
    %c5_i32_31 = arith.constant 5 : i32
    %71 = vector.broadcast %c5_i32_31 : i32 to vector<1x8xi32>
    %72 = arith.cmpi slt, %32, %71 : vector<1x8xi32>
    %73 = arith.andi %70, %72 : vector<1x8xi1>
    %cst_32 = arith.constant 0.000000e+00 : f32
    %74 = vector.shape_cast %73 : vector<1x8xi1> to vector<1x8xi1>
    %75 = vector.broadcast %74 : vector<1x8xi1> to vector<8x8xi1>
    %76 = vector.broadcast %cst_32 : f32 to vector<8x8xf32>
    %77 = arith.select %75, %67, %76 : vector<8x8xi1>, vector<8x8xf32>
    %cst_33 = arith.constant dense<0.000000e+00> : vector<8xf32>
    %78 = vector.multi_reduction <add>, %77, %cst_33 [1] : vector<8x8xf32> to vector<8xf32>
    %79 = vector.shape_cast %78 : vector<8xf32> to vector<8x1xf32>
    %80 = vector.shape_cast %73 : vector<1x8xi1> to vector<1x8xi1>
    %81 = vector.broadcast %80 : vector<1x8xi1> to vector<8x8xi1>
    %82 = vector.shape_cast %79 : vector<8x1xf32> to vector<8x1xf32>
    %83 = vector.broadcast %82 : vector<8x1xf32> to vector<8x8xf32>
    %84 = arith.select %81, %83, %68 : vector<8x8xi1>, vector<8x8xf32>
    %c5_i32_34 = arith.constant 5 : i32
    %85 = vector.broadcast %c5_i32_34 : i32 to vector<1x8xi32>
    %86 = arith.cmpi sge, %32, %85 : vector<1x8xi32>
    %c8_i32_35 = arith.constant 8 : i32
    %87 = vector.broadcast %c8_i32_35 : i32 to vector<1x8xi32>
    %88 = arith.cmpi slt, %32, %87 : vector<1x8xi32>
    %89 = arith.andi %86, %88 : vector<1x8xi1>
    %cst_36 = arith.constant 0.000000e+00 : f32
    %90 = vector.shape_cast %89 : vector<1x8xi1> to vector<1x8xi1>
    %91 = vector.broadcast %90 : vector<1x8xi1> to vector<8x8xi1>
    %92 = vector.broadcast %cst_36 : f32 to vector<8x8xf32>
    %93 = arith.select %91, %67, %92 : vector<8x8xi1>, vector<8x8xf32>
    %cst_37 = arith.constant dense<0.000000e+00> : vector<8xf32>
    %94 = vector.multi_reduction <add>, %93, %cst_37 [1] : vector<8x8xf32> to vector<8xf32>
    %95 = vector.shape_cast %94 : vector<8xf32> to vector<8x1xf32>
    %96 = vector.shape_cast %89 : vector<1x8xi1> to vector<1x8xi1>
    %97 = vector.broadcast %96 : vector<1x8xi1> to vector<8x8xi1>
    %98 = vector.shape_cast %95 : vector<8x1xf32> to vector<8x1xf32>
    %99 = vector.broadcast %98 : vector<8x1xf32> to vector<8x8xf32>
    %100 = arith.select %97, %99, %84 : vector<8x8xi1>, vector<8x8xf32>
    %101 = tpu.reciprocal %100 : vector<8x8xf32> -> vector<8x8xf32>
    %102 = arith.mulf %67, %101 : vector<8x8xf32>
    %cst_38 = arith.constant 0.000000e+00 : f32
    %103 = vector.broadcast %cst_38 : f32 to vector<8x2xf32>
    %104 = arith.subf %103, %28 : vector<8x2xf32>
    %105 = math.exp %104 : vector<8x2xf32>
    %cst_39 = arith.constant 1.000000e+00 : f32
    %106 = vector.broadcast %cst_39 : f32 to vector<8x2xf32>
    %107 = arith.addf %106, %105 : vector<8x2xf32>
    %108 = tpu.reciprocal %107 : vector<8x2xf32> -> vector<8x2xf32>
    %cst_40 = arith.constant 0.000000e+00 : f32
    %109 = vector.broadcast %cst_40 : f32 to vector<8x110xf32>
    %110 = tpu.concatenate %31, %102, %108, %109 in 1 : vector<8x8xf32>, vector<8x8xf32>, vector<8x2xf32>, vector<8x110xf32> -> vector<8x128xf32>
    %111 = arith.truncf %110 : vector<8x128xf32> to vector<8x128xbf16>
    %c0_41 = arith.constant 0 : index
    %c0_42 = arith.constant 0 : index
    %112 = vector.load %arg10[%c0_41, %c0_42] : memref<8x128xbf16, #tpu.memory_space<vmem>>, vector<8x128xbf16>
    tpu.vector_store %arg10[%c0_41, %c0_42], %111 {strides = array<i32>} : memref<8x128xbf16, #tpu.memory_space<vmem>>, vector<8x128xbf16>,
    return
  }
  func.func @transform_0(%arg0: i32) -> (i32, i32) {
    %c0_i32 = arith.constant 0 : i32
    %c0_i32_0 = arith.constant 0 : i32
    return %arg0, %c0_i32 : i32, i32
  }
  func.func @transform_1(%arg0: i32) -> (i32, i32) {
    %c0_i32 = arith.constant 0 : i32
    %c0_i32_0 = arith.constant 0 : i32
    %c0_i32_1 = arith.constant 0 : i32
    return %c0_i32, %c0_i32_0 : i32, i32
  }
  func.func @transform_2(%arg0: i32) -> (i32, i32) {
    %c0_i32 = arith.constant 0 : i32
    %c0_i32_0 = arith.constant 0 : i32
    %c0_i32_1 = arith.constant 0 : i32
    return %c0_i32, %c0_i32_0 : i32, i32
  }
  func.func @transform_3(%arg0: i32) -> (i32, i32) {
    %c0_i32 = arith.constant 0 : i32
    %c0_i32_0 = arith.constant 0 : i32
    %c0_i32_1 = arith.constant 0 : i32
    return %c0_i32, %c0_i32_0 : i32, i32
  }
  func.func @transform_4(%arg0: i32) -> (i32, i32) {
    %c0_i32 = arith.constant 0 : i32
    %c0_i32_0 = arith.constant 0 : i32
    %c0_i32_1 = arith.constant 0 : i32
    return %c0_i32, %c0_i32_0 : i32, i32
  }
  func.func @transform_5(%arg0: i32) -> (i32, i32) {
    %c0_i32 = arith.constant 0 : i32
    %c0_i32_0 = arith.constant 0 : i32
    %c0_i32_1 = arith.constant 0 : i32
    return %c0_i32, %c0_i32_0 : i32, i32
  }
  func.func @transform_6(%arg0: i32) -> (i32, i32) {
    %c0_i32 = arith.constant 0 : i32
    %c0_i32_0 = arith.constant 0 : i32
    %c0_i32_1 = arith.constant 0 : i32
    return %c0_i32, %c0_i32_0 : i32, i32
  }
  func.func @transform_7(%arg0: i32) -> (i32, i32) {
    %c0_i32 = arith.constant 0 : i32
    %c0_i32_0 = arith.constant 0 : i32
    %c0_i32_1 = arith.constant 0 : i32
    return %c0_i32, %c0_i32_0 : i32, i32
  }
  func.func @transform_8(%arg0: i32) -> (i32, i32) {
    %c0_i32 = arith.constant 0 : i32
    %c0_i32_0 = arith.constant 0 : i32
    %c0_i32_1 = arith.constant 0 : i32
    return %c0_i32, %c0_i32_0 : i32, i32
  }
  func.func @transform_9(%arg0: i32) -> (i32, i32) {
    %c0_i32 = arith.constant 0 : i32
    %c0_i32_0 = arith.constant 0 : i32
    return %arg0, %c0_i32 : i32, i32
  }
}

</mosaic_0001>

<llo_original>
// kernel: tpu_custom_call.1
$region0: #{tpu_custom_call.1}
  #allocation0 [shape = 'u32[]', space=smem, size = 0x4, offset = 0x4, fixed_abs, tag = 'smem constant byte address 0x4 - core index']
  #allocation1 [shape = 'u32[144,128]{1,0:T(1,128)}', space=vmem, size = 0x12000, scoped, tag = 'internal scratch']
  %s0 = inlined_call_operand.vmem [shape: bf16[8,32], index: 0, kind: input, shape index: {}]
  %s1 = inlined_call_operand.vmem [shape: bf16[32,64], index: 1, kind: input, shape index: {}]
  %s2 = inlined_call_operand.vmem [shape: f32[1,64], index: 2, kind: input, shape index: {}]
  %s3 = inlined_call_operand.vmem [shape: bf16[64,32], index: 3, kind: input, shape index: {}]
  %s4 = inlined_call_operand.vmem [shape: f32[1,32], index: 4, kind: input, shape index: {}]
  %s5 = inlined_call_operand.vmem [shape: bf16[32,34], index: 5, kind: input, shape index: {}]
  %s6 = inlined_call_operand.vmem [shape: f32[1,34], index: 6, kind: input, shape index: {}]
  %s7 = inlined_call_operand.vmem [shape: bf16[32,8], index: 7, kind: input, shape index: {}]
  %s8 = inlined_call_operand.vmem [shape: f32[1,8], index: 8, kind: input, shape index: {}]
  %s9 = inlined_call_operand.hbm [shape: bf16[8,128], index: 9, kind: output, shape index: {}]
  %s10 = sld [smem:[#allocation0]]
  $region46: #{tpu_custom_call.1} parent=0
    _
  %s12 = ssub.s32 1, %s10
  %s13 = scalar_select 0, %s12, %s10
  $region1: #{tpu_custom_call.1} parent=0
    #allocation2 [shape = 'u8[2048]{0}', space=vmem, size = 0x800, scoped, tag = 'output window, operand 0, single buffered']
    #allocation3 [shape = 's32[1]{0}', space=sflag, size = 0x4, scoped, tag = 'scoped memory for tpu_custom_call.1']
    %14 = vsyncpa [#allocation3], 0
    // Predicated region
    $region2: #{tpu_custom_call.1} parent=1 // pred_check
      _
    $region3: #{tpu_custom_call.1} parent=1 // pred_check_branch
      %16 = sbr.rel (0) target = $region5
    $region4: #{tpu_custom_call.1} parent=1 // pred_region
      _
    $region5: #{tpu_custom_call.1} parent=1 // pred_fallthru
      _
    // Predicated region
    $region6: #{tpu_custom_call.1} parent=1 // pred_check
      _
    $region7: #{tpu_custom_call.1} parent=1 // pred_check_branch
      %18 = sbr.rel (0) target = $region9
    $region8: #{tpu_custom_call.1} parent=1 // pred_region
      _
    $region9: #{tpu_custom_call.1} parent=1 // pred_fallthru
      _
    // Predicated region
    $region10: #{tpu_custom_call.1} parent=1 // pred_check
      _
    $region11: #{tpu_custom_call.1} parent=1 // pred_check_branch
      %20 = sbr.rel (0) target = $region13
    $region12: #{tpu_custom_call.1} parent=1 // pred_region
      _
    $region13: #{tpu_custom_call.1} parent=1 // pred_fallthru
      _
    // Predicated region
    $region14: #{tpu_custom_call.1} parent=1 // pred_check
      _
    $region15: #{tpu_custom_call.1} parent=1 // pred_check_branch
      %22 = sbr.rel (0) target = $region17
    $region16: #{tpu_custom_call.1} parent=1 // pred_region
      _
    $region17: #{tpu_custom_call.1} parent=1 // pred_fallthru
      _
    // Predicated region
    $region18: #{tpu_custom_call.1} parent=1 // pred_check
      _
    $region19: #{tpu_custom_call.1} parent=1 // pred_check_branch
      %24 = sbr.rel (0) target = $region21
    $region20: #{tpu_custom_call.1} parent=1 // pred_region
      _
    $region21: #{tpu_custom_call.1} parent=1 // pred_fallthru
      _
    // Predicated region
    $region22: #{tpu_custom_call.1} parent=1 // pred_check
      _
    $region23: #{tpu_custom_call.1} parent=1 // pred_check_branch
      %26 = sbr.rel (0) target = $region25
    $region24: #{tpu_custom_call.1} parent=1 // pred_region
      _
    $region25: #{tpu_custom_call.1} parent=1 // pred_fallthru
      _
    // Predicated region
    $region26: #{tpu_custom_call.1} parent=1 // pred_check
      _
    $region27: #{tpu_custom_call.1} parent=1 // pred_check_branch
      %28 = sbr.rel (0) target = $region29
    $region28: #{tpu_custom_call.1} parent=1 // pred_region
      _
    $region29: #{tpu_custom_call.1} parent=1 // pred_fallthru
      _
    // Predicated region
    $region30: #{tpu_custom_call.1} parent=1 // pred_check
      _
    $region31: #{tpu_custom_call.1} parent=1 // pred_check_branch
      %30 = sbr.rel (0) target = $region33
    $region32: #{tpu_custom_call.1} parent=1 // pred_region
      _
    $region33: #{tpu_custom_call.1} parent=1 // pred_fallthru
      _
    // Predicated region
    $region34: #{tpu_custom_call.1} parent=1 // pred_check
      _
    $region35: #{tpu_custom_call.1} parent=1 // pred_check_branch
      %32 = sbr.rel (0) target = $region37
    $region36: #{tpu_custom_call.1} parent=1 // pred_region
      _
    $region37: #{tpu_custom_call.1} parent=1 // pred_fallthru
      _
    %v34 = vld [vmem:[%s0] sm:$0xf]
    %v35 = vld [vmem:[%s1] sm:$0xf]
    %v36 = vld [vmem:[%s1 + $0x4] sm:$0xf]
    %v37 = vld [vmem:[%s1 + $0x8] sm:$0xf]
    %v38 = vld [vmem:[%s1 + $0xc] sm:$0xf]
    %v39 = vld [vmem:[%s2] sm:$0x1]
    %v41 = vlaneseq
    %v42 = vshrl.u32 %v41, 7
    %v43 = vsub.s32 0, %v42
    %v44 = vrot.slane %v39, %v43
    %v50 = vunpack.c.l.b16 %v35
    %v51 = vunpack.c.l.b16 %v36
    %v52 = vunpack.c.l.b16 %v37
    %v53 = vunpack.c.l.b16 %v38
    %v54 = vpack.c.b16 %v51, %v50
    %v55 = vpack.c.b16 %v53, %v52
    %vm58 = vcmask 261120
    %v60 = vsel %vm58, %v34, 0
    %62 = vmatprep.subr.bf16.mxu0 0
    %63 = vmatpush1.bf16.msra.mxu0 %v54
    %64 = vmatprep.subr.bf16.mxu0 0
    %65 = vmatpush1.bf16.msra.mxu0 %v55
    %66 = vmatprep.subr.bf16.mxu0 0
    %67 = vmatpush1.bf16.msra.mxu0 0
    %68 = vmatprep.subr.bf16.mxu0 0
    %69 = vmatpush1.bf16.msra.mxu0 0
    %70 = vmatprep.subr.bf16.mxu0 0
    %71 = vmatpush1.bf16.msra.mxu0 0
    %72 = vmatprep.subr.bf16.mxu0 0
    %73 = vmatpush1.bf16.msra.mxu0 0
    %74 = vmatprep.subr.bf16.mxu0 0
    %75 = vmatpush1.bf16.msra.mxu0 0
    %76 = vmatprep.subr.bf16.mxu0 0
    %77 = vmatpush1.bf16.msra.mxu0 0
    %78 = vmatprep.subr.bf16.mxu0 0
    %79 = vmatpush1.bf16.msra.mxu0 0
    %80 = vmatprep.subr.bf16.mxu0 0
    %81 = vmatpush1.bf16.msra.mxu0 0
    %82 = vmatprep.subr.bf16.mxu0 0
    %83 = vmatpush1.bf16.msra.mxu0 0
    %84 = vmatprep.subr.bf16.mxu0 0
    %85 = vmatpush1.bf16.msra.mxu0 0
    %86 = vmatprep.subr.bf16.mxu0 0
    %87 = vmatpush1.bf16.msra.mxu0 0
    %88 = vmatprep.subr.bf16.mxu0 0
    %89 = vmatpush1.bf16.msra.mxu0 0
    %90 = vmatprep.subr.bf16.mxu0 0
    %91 = vmatpush1.bf16.msra.mxu0 0
    %92 = vmatprep.subr.bf16.mxu0 0
    %93 = vmatpush1.bf16.msra.mxu0 0
    %94 = vmatprep.mubr.bf16.mxu0 0
    %95 = vmatmul.mubr.bf16.gmra.mrb[0].mxu0 %v60
    %v96 = vpop.f32.mrb[0].mxu0
    %v97 = vadd.f32 %v44, %v96
    %v98 = vpop.f32.mrb[0].mxu0
    %v99 = vpop.f32.mrb[0].mxu0
    %v100 = vpop.f32.mrb[0].mxu0
    %101 = vdwg.mxu0
    %v102 = vmax.f32 %v97, 0.0
    %v103 = vpack.c.bf16 %v102, %v102
    %v104 = vld [vmem:[%s3] sm:$0xf]
    %v105 = vld [vmem:[%s3 + $0x4] sm:$0xf]
    %v106 = vld [vmem:[%s3 + $0x8] sm:$0xf]
    %v107 = vld [vmem:[%s3 + $0xc] sm:$0xf]
    %v108 = vld [vmem:[%s3 + $0x10] sm:$0xf]
    %v109 = vld [vmem:[%s3 + $0x14] sm:$0xf]
    %v110 = vld [vmem:[%s3 + $0x18] sm:$0xf]
    %v111 = vld [vmem:[%s3 + $0x1c] sm:$0xf]
    %v112 = vld [vmem:[%s4] sm:$0x1]
    %v114 = vlaneseq
    %v115 = vshrl.u32 %v114, 7
    %v116 = vsub.s32 0, %v115
    %v117 = vrot.slane %v112, %v116
    %v127 = vunpack.c.l.b16 %v104
    %v128 = vunpack.c.l.b16 %v105
    %v129 = vunpack.c.l.b16 %v106
    %v130 = vunpack.c.l.b16 %v107
    %v131 = vunpack.c.l.b16 %v108
    %v132 = vunpack.c.l.b16 %v109
    %v133 = vunpack.c.l.b16 %v110
    %v134 = vunpack.c.l.b16 %v111
    %v135 = vpack.c.b16 %v128, %v127
    %v136 = vpack.c.b16 %v130, %v129
    %v137 = vpack.c.b16 %v132, %v131
    %v138 = vpack.c.b16 %v134, %v133
    %vm143 = vcmask 523264
    %v145 = vsel %vm143, %v103, 0
    %147 = vmatprep.subr.bf16.mxu0 0
    %148 = vmatpush1.bf16.msra.mxu0 %v135
    %149 = vmatprep.subr.bf16.mxu0 0
    %150 = vmatpush1.bf16.msra.mxu0 %v136
    %151 = vmatprep.subr.bf16.mxu0 0
    %152 = vmatpush1.bf16.msra.mxu0 %v137
    %153 = vmatprep.subr.bf16.mxu0 0
    %154 = vmatpush1.bf16.msra.mxu0 %v138
    %155 = vmatprep.subr.bf16.mxu0 0
    %156 = vmatpush1.bf16.msra.mxu0 0
    %157 = vmatprep.subr.bf16.mxu0 0
    %158 = vmatpush1.bf16.msra.mxu0 0
    %159 = vmatprep.subr.bf16.mxu0 0
    %160 = vmatpush1.bf16.msra.mxu0 0
    %161 = vmatprep.subr.bf16.mxu0 0
    %162 = vmatpush1.bf16.msra.mxu0 0
    %163 = vmatprep.subr.bf16.mxu0 0
    %164 = vmatpush1.bf16.msra.mxu0 0
    %165 = vmatprep.subr.bf16.mxu0 0
    %166 = vmatpush1.bf16.msra.mxu0 0
    %167 = vmatprep.subr.bf16.mxu0 0
    %168 = vmatpush1.bf16.msra.mxu0 0
    %169 = vmatprep.subr.bf16.mxu0 0
    %170 = vmatpush1.bf16.msra.mxu0 0
    %171 = vmatprep.subr.bf16.mxu0 0
    %172 = vmatpush1.bf16.msra.mxu0 0
    %173 = vmatprep.subr.bf16.mxu0 0
    %174 = vmatpush1.bf16.msra.mxu0 0
    %175 = vmatprep.subr.bf16.mxu0 0
    %176 = vmatpush1.bf16.msra.mxu0 0
    %177 = vmatprep.subr.bf16.mxu0 0
    %178 = vmatpush1.bf16.msra.mxu0 0
    %179 = vmatprep.mubr.bf16.mxu0 0
    %180 = vmatmul.mubr.bf16.gmra.mrb[0].mxu0 %v145
    %v181 = vpop.f32.mrb[0].mxu0
    %v182 = vadd.f32 %v117, %v181
    %v183 = vpop.f32.mrb[0].mxu0
    %v184 = vpop.f32.mrb[0].mxu0
    %v185 = vpop.f32.mrb[0].mxu0
    %186 = vdwg.mxu0
    %v187 = vmax.f32 %v182, 0.0
    %v188 = vpack.c.bf16 %v187, %v187
    %v189 = vld [vmem:[%s5] sm:$0xf]
    %v190 = vld [vmem:[%s5 + $0x4] sm:$0xf]
    %v191 = vld [vmem:[%s5 + $0x8] sm:$0xf]
    %v192 = vld [vmem:[%s5 + $0xc] sm:$0xf]
    %v193 = vld [vmem:[%s6] sm:$0x1]
    %v194 = vld [vmem:[%s7] sm:$0xf]
    %v195 = vld [vmem:[%s7 + $0x4] sm:$0xf]
    %v196 = vld [vmem:[%s7 + $0x8] sm:$0xf]
    %v197 = vld [vmem:[%s7 + $0xc] sm:$0xf]
    %v198 = vld [vmem:[%s8] sm:$0x1]
    %v200 = vlaneseq
    %v201 = vshrl.u32 %v200, 7
    %v202 = vsub.s32 0, %v201
    %v203 = vrot.slane %v193, %v202
    %v209 = vunpack.c.l.b16 %v189
    %v210 = vunpack.c.l.b16 %v190
    %v211 = vunpack.c.l.b16 %v191
    %v212 = vunpack.c.l.b16 %v192
    %v213 = vpack.c.b16 %v210, %v209
    %v214 = vpack.c.b16 %v212, %v211
    %v218 = vsel %vm58, %v188, 0
    %220 = vmatprep.subr.bf16.mxu0 0
    %221 = vmatpush1.bf16.msra.mxu0 %v213
    %222 = vmatprep.subr.bf16.mxu0 0
    %223 = vmatpush1.bf16.msra.mxu0 %v214
    %224 = vmatprep.subr.bf16.mxu0 0
    %225 = vmatpush1.bf16.msra.mxu0 0
    %226 = vmatprep.subr.bf16.mxu0 0
    %227 = vmatpush1.bf16.msra.mxu0 0
    %228 = vmatprep.subr.bf16.mxu0 0
    %229 = vmatpush1.bf16.msra.mxu0 0
    %230 = vmatprep.subr.bf16.mxu0 0
    %231 = vmatpush1.bf16.msra.mxu0 0
    %232 = vmatprep.subr.bf16.mxu0 0
    %233 = vmatpush1.bf16.msra.mxu0 0
    %234 = vmatprep.subr.bf16.mxu0 0
    %235 = vmatpush1.bf16.msra.mxu0 0
    %236 = vmatprep.subr.bf16.mxu0 0
    %237 = vmatpush1.bf16.msra.mxu0 0
    %238 = vmatprep.subr.bf16.mxu0 0
    %239 = vmatpush1.bf16.msra.mxu0 0
    %240 = vmatprep.subr.bf16.mxu0 0
    %241 = vmatpush1.bf16.msra.mxu0 0
    %242 = vmatprep.subr.bf16.mxu0 0
    %243 = vmatpush1.bf16.msra.mxu0 0
    %244 = vmatprep.subr.bf16.mxu0 0
    %245 = vmatpush1.bf16.msra.mxu0 0
    %246 = vmatprep.subr.bf16.mxu0 0
    %247 = vmatpush1.bf16.msra.mxu0 0
    %248 = vmatprep.subr.bf16.mxu0 0
    %249 = vmatpush1.bf16.msra.mxu0 0
    %250 = vmatprep.subr.bf16.mxu0 0
    %251 = vmatpush1.bf16.msra.mxu0 0
    %252 = vmatprep.mubr.bf16.mxu0 0
    %253 = vmatmul.mubr.bf16.gmra.mrb[0].mxu0 %v218
    %v254 = vpop.f32.mrb[0].mxu0
    %v255 = vadd.f32 %v203, %v254
    %v256 = vpop.f32.mrb[0].mxu0
    %v257 = vpop.f32.mrb[0].mxu0
    %v258 = vpop.f32.mrb[0].mxu0
    %259 = vdwg.mxu0
    %v260 = vmax.f32 %v255, 0.0
    %v261 = vpack.c.bf16 %v260, %v260
    %v263 = vlaneseq
    %v264 = vshrl.u32 %v263, 7
    %v265 = vsub.s32 0, %v264
    %v266 = vrot.slane %v198, %v265
    %v272 = vunpack.c.l.b16 %v194
    %v273 = vunpack.c.l.b16 %v195
    %v274 = vunpack.c.l.b16 %v196
    %v275 = vunpack.c.l.b16 %v197
    %v276 = vpack.c.b16 %v273, %v272
    %v277 = vpack.c.b16 %v275, %v274
    %v281 = vsel %vm58, %v261, 0
    %283 = vmatprep.subr.bf16.mxu0 0
    %284 = vmatpush1.bf16.msra.mxu0 %v276
    %285 = vmatprep.subr.bf16.mxu0 0
    %286 = vmatpush1.bf16.msra.mxu0 %v277
    %287 = vmatprep.subr.bf16.mxu0 0
    %288 = vmatpush1.bf16.msra.mxu0 0
    %289 = vmatprep.subr.bf16.mxu0 0
    %290 = vmatpush1.bf16.msra.mxu0 0
    %291 = vmatprep.subr.bf16.mxu0 0
    %292 = vmatpush1.bf16.msra.mxu0 0
    %293 = vmatprep.subr.bf16.mxu0 0
    %294 = vmatpush1.bf16.msra.mxu0 0
    %295 = vmatprep.subr.bf16.mxu0 0
    %296 = vmatpush1.bf16.msra.mxu0 0
    %297 = vmatprep.subr.bf16.mxu0 0
    %298 = vmatpush1.bf16.msra.mxu0 0
    %299 = vmatprep.subr.bf16.mxu0 0
    %300 = vmatpush1.bf16.msra.mxu0 0
    %301 = vmatprep.subr.bf16.mxu0 0
    %302 = vmatpush1.bf16.msra.mxu0 0
    %303 = vmatprep.subr.bf16.mxu0 0
    %304 = vmatpush1.bf16.msra.mxu0 0
    %305 = vmatprep.subr.bf16.mxu0 0
    %306 = vmatpush1.bf16.msra.mxu0 0
    %307 = vmatprep.subr.bf16.mxu0 0
    %308 = vmatpush1.bf16.msra.mxu0 0
    %309 = vmatprep.subr.bf16.mxu0 0
    %310 = vmatpush1.bf16.msra.mxu0 0
    %311 = vmatprep.subr.bf16.mxu0 0
    %312 = vmatpush1.bf16.msra.mxu0 0
    %313 = vmatprep.subr.bf16.mxu0 0
    %314 = vmatpush1.bf16.msra.mxu0 0
    %315 = vmatprep.mubr.bf16.mxu0 0
    %316 = vmatmul.mubr.bf16.gmra.mrb[0].mxu0 %v281
    %v317 = vpop.f32.mrb[0].mxu0
    %v318 = vadd.f32 %v266, %v317
    %v319 = vpop.f32.mrb[0].mxu0
    %v320 = vpop.f32.mrb[0].mxu0
    %v321 = vpop.f32.mrb[0].mxu0
    %322 = vdwg.mxu0
    %v323 = vlaneseq
    %v324 = vand.u32 %v323, 127
    %vm325 = vcmp.ge.s32.totalorder %v324, 0
    %vm326 = vcmp.lt.s32.totalorder %v324, 5
    %vm327 = vmand %vm325, %vm326
    %v328 = vsel %vm327, 1, 0
    %vm329 = vcmp.eq.s32.totalorder %v328, 1
    %v330 = vsel %vm329, %v318, -inf
    %vm331 = vcmask 64512
    %v332 = vsel %vm331, %v330, -inf
    %333 = vmax.xlane.f32.xlu0 %v332
    %v334 = vpop.xlane.xlu0 %333
    %v335 = vsel %vm329, %v334, 0.0
    %vm336 = vcmp.ge.s32.totalorder %v324, 5
    %vm337 = vcmp.lt.s32.totalorder %v324, 8
    %vm338 = vmand %vm336, %vm337
    %v339 = vsel %vm338, 1, 0
    %vm340 = vcmp.eq.s32.totalorder %v339, 1
    %v341 = vsel %vm340, %v318, -inf
    %v342 = vsel %vm331, %v341, -inf
    %343 = vmax.xlane.f32.xlu0 %v342
    %v344 = vpop.xlane.xlu0 %343
    %v345 = vsel %vm340, %v344, %v335
    %v346 = vsub.f32 %v318, %v345
    %v347 = vmul.f32 %v346, 1.442695
    %v348 = vpow.pop %v347
    %v349 = vsel %vm329, %v348, 0.0
    %v350 = vsel %vm331, %v349, 0.0
    %351 = vadd.xlane.f32.xlu0 %v350
    %v352 = vpop.xlane.xlu0 %351
    %v353 = vsel %vm329, %v352, 1.0
    %v354 = vsel %vm340, %v348, 0.0
    %v355 = vsel %vm331, %v354, 0.0
    %356 = vadd.xlane.f32.xlu0 %v355
    %v357 = vpop.xlane.xlu0 %356
    %v358 = vsel %vm340, %v357, %v353
    %v359 = vrcp.pop %v358
    %v360 = vmul.f32 %v348, %v359
    %v361 = vsub.f32 0.0, %v255
    %v362 = vmul.f32 %v361, 1.442695
    %v363 = vpow.pop %v362
    %v364 = vadd.f32 %v363, 1.0
    %v365 = vrcp.pop %v364
    %367 = vrot.lane.b32.xlu0 %v360, 8
    %v368 = vpop.permute.xlu0 %367
    %371 = vrot.lane.b32.xlu0 %v365, 112
    %v372 = vpop.permute.xlu0 %371
    %v374 = vsel %vm331, %v318, %v368
    %vm375 = vcmask 130048
    %v376 = vsel %vm375, %v374, %v372
    %vm377 = vcmask 146432
    %v378 = vsel %vm377, %v376, 0.0
    %v379 = vpack.c.bf16 %v378, %v378
    %380 = vst [vmem:[#allocation2] sm:$0xf] %v379
    // Predicated region
    $region38: #{tpu_custom_call.1} parent=1 // pred_check
      _
    $region39: #{tpu_custom_call.1} parent=1 // pred_check_branch
      %382 = sbr.rel (0) target = $region41
    $region40: #{tpu_custom_call.1} parent=1 // pred_region
      %s384 = ssub.s32 64, 64
      %385 = vsyncadd [#allocation3], %s384
      %s387 = sshll.u32 [#allocation2], 4
      %s388 = int_to_ptr.vmem [resolvable:$true] %s387
      %390 = dma.vmem_to_hbm [thread:$0]  %s388, 64, %s9, [#allocation3]
    $region41: #{tpu_custom_call.1} parent=1 // pred_fallthru
      _
    // Predicated region
    $region42: #{tpu_custom_call.1} parent=1 // pred_check
      _
    $region43: #{tpu_custom_call.1} parent=1 // pred_check_branch
      %392 = sbr.rel (0) target = $region45
    $region44: #{tpu_custom_call.1} parent=1 // pred_region
      %393 = dma.done [#allocation3], 64
    $region45: #{tpu_custom_call.1} parent=1 // pred_fallthru
      _
    %394 = vsyncpa [#allocation3], 1

// kernel: tpu_custom_call.1
$region0: #{tpu_custom_call.1}
  #allocation0 [shape = 'u32[]', space=smem, size = 0x4, offset = 0x4, fixed_abs, tag = 'smem constant byte address 0x4 - core index']
  #allocation1 [shape = 'u32[144,128]{1,0:T(1,128)}', space=vmem, size = 0x12000, scoped, tag = 'internal scratch']
  %s0 = inlined_call_operand.vmem [shape: bf16[8,32], index: 0, kind: input, shape index: {}]
  %s1 = inlined_call_operand.vmem [shape: bf16[32,64], index: 1, kind: input, shape index: {}]
  %s2 = inlined_call_operand.vmem [shape: f32[1,64], index: 2, kind: input, shape index: {}]
  %s3 = inlined_call_operand.vmem [shape: bf16[64,32], index: 3, kind: input, shape index: {}]
  %s4 = inlined_call_operand.vmem [shape: f32[1,32], index: 4, kind: input, shape index: {}]
  %s5 = inlined_call_operand.vmem [shape: bf16[32,34], index: 5, kind: input, shape index: {}]
  %s6 = inlined_call_operand.vmem [shape: f32[1,34], index: 6, kind: input, shape index: {}]
  %s7 = inlined_call_operand.vmem [shape: bf16[32,8], index: 7, kind: input, shape index: {}]
  %s8 = inlined_call_operand.vmem [shape: f32[1,8], index: 8, kind: input, shape index: {}]
  %s9 = inlined_call_operand.hbm [shape: bf16[8,128], index: 9, kind: output, shape index: {}]
  %s10 = sld [smem:[#allocation0]]
  $region46: #{tpu_custom_call.1} parent=0
    _
  %s12 = ssub.s32 1, %s10
  %s13 = scalar_select 0, %s12, %s10
  $region1: #{tpu_custom_call.1} parent=0
    #allocation2 [shape = 'u8[2048]{0}', space=vmem, size = 0x800, scoped, tag = 'output window, operand 0, single buffered']
    #allocation3 [shape = 's32[1]{0}', space=sflag, size = 0x4, scoped, tag = 'scoped memory for tpu_custom_call.1']
    %14 = vsyncpa [#allocation3], 0
    // Predicated region
    $region2: #{tpu_custom_call.1} parent=1 // pred_check
      _
    $region3: #{tpu_custom_call.1} parent=1 // pred_check_branch
      %16 = sbr.rel (0) target = $region5
    $region4: #{tpu_custom_call.1} parent=1 // pred_region
      _
    $region5: #{tpu_custom_call.1} parent=1 // pred_fallthru
      _
    // Predicated region
    $region6: #{tpu_custom_call.1} parent=1 // pred_check
      _
    $region7: #{tpu_custom_call.1} parent=1 // pred_check_branch
      %18 = sbr.rel (0) target = $region9
    $region8: #{tpu_custom_call.1} parent=1 // pred_region
      _
    $region9: #{tpu_custom_call.1} parent=1 // pred_fallthru
      _
    // Predicated region
    $region10: #{tpu_custom_call.1} parent=1 // pred_check
      _
    $region11: #{tpu_custom_call.1} parent=1 // pred_check_branch
      %20 = sbr.rel (0) target = $region13
    $region12: #{tpu_custom_call.1} parent=1 // pred_region
      _
    $region13: #{tpu_custom_call.1} parent=1 // pred_fallthru
      _
    // Predicated region
    $region14: #{tpu_custom_call.1} parent=1 // pred_check
      _
    $region15: #{tpu_custom_call.1} parent=1 // pred_check_branch
      %22 = sbr.rel (0) target = $region17
    $region16: #{tpu_custom_call.1} parent=1 // pred_region
      _
    $region17: #{tpu_custom_call.1} parent=1 // pred_fallthru
      _
    // Predicated region
    $region18: #{tpu_custom_call.1} parent=1 // pred_check
      _
    $region19: #{tpu_custom_call.1} parent=1 // pred_check_branch
      %24 = sbr.rel (0) target = $region21
    $region20: #{tpu_custom_call.1} parent=1 // pred_region
      _
    $region21: #{tpu_custom_call.1} parent=1 // pred_fallthru
      _
    // Predicated region
    $region22: #{tpu_custom_call.1} parent=1 // pred_check
      _
    $region23: #{tpu_custom_call.1} parent=1 // pred_check_branch
      %26 = sbr.rel (0) target = $region25
    $region24: #{tpu_custom_call.1} parent=1 // pred_region
      _
    $region25: #{tpu_custom_call.1} parent=1 // pred_fallthru
      _
    // Predicated region
    $region26: #{tpu_custom_call.1} parent=1 // pred_check
      _
    $region27: #{tpu_custom_call.1} parent=1 // pred_check_branch
      %28 = sbr.rel (0) target = $region29
    $region28: #{tpu_custom_call.1} parent=1 // pred_region
      _
    $region29: #{tpu_custom_call.1} parent=1 // pred_fallthru
      _
    // Predicated region
    $region30: #{tpu_custom_call.1} parent=1 // pred_check
      _
    $region31: #{tpu_custom_call.1} parent=1 // pred_check_branch
      %30 = sbr.rel (0) target = $region33
    $region32: #{tpu_custom_call.1} parent=1 // pred_region
      _
    $region33: #{tpu_custom_call.1} parent=1 // pred_fallthru
      _
    // Predicated region
    $region34: #{tpu_custom_call.1} parent=1 // pred_check
      _
    $region35: #{tpu_custom_call.1} parent=1 // pred_check_branch
      %32 = sbr.rel (0) target = $region37
    $region36: #{tpu_custom_call.1} parent=1 // pred_region
      _
    $region37: #{tpu_custom_call.1} parent=1 // pred_fallthru
      _
    %v34 = vld [vmem:[%s0] sm:$0xf]
    %v35 = vld [vmem:[%s1] sm:$0xf]
    %v36 = vld [vmem:[%s1 + $0x4] sm:$0xf]
    %v37 = vld [vmem:[%s1 + $0x8] sm:$0xf]
    %v38 = vld [vmem:[%s1 + $0xc] sm:$0xf]
    %v39 = vld [vmem:[%s2] sm:$0x1]
    %v41 = vlaneseq
    %v42 = vshrl.u32 %v41, 7
    %v43 = vsub.s32 0, %v42
    %v44 = vrot.slane %v39, %v43
    %v50 = vunpack.c.l.b16 %v35
    %v51 = vunpack.c.l.b16 %v36
    %v52 = vunpack.c.l.b16 %v37
    %v53 = vunpack.c.l.b16 %v38
    %v54 = vpack.c.b16 %v51, %v50
    %v55 = vpack.c.b16 %v53, %v52
    %vm58 = vcmask 261120
    %v60 = vsel %vm58, %v34, 0
    %62 = vmatprep.subr.bf16.mxu0 0
    %63 = vmatpush1.bf16.msra.mxu0 %v54
    %64 = vmatprep.subr.bf16.mxu0 0
    %65 = vmatpush1.bf16.msra.mxu0 %v55
    %66 = vmatprep.subr.bf16.mxu0 0
    %67 = vmatpush1.bf16.msra.mxu0 0
    %68 = vmatprep.subr.bf16.mxu0 0
    %69 = vmatpush1.bf16.msra.mxu0 0
    %70 = vmatprep.subr.bf16.mxu0 0
    %71 = vmatpush1.bf16.msra.mxu0 0
    %72 = vmatprep.subr.bf16.mxu0 0
    %73 = vmatpush1.bf16.msra.mxu0 0
    %74 = vmatprep.subr.bf16.mxu0 0
    %75 = vmatpush1.bf16.msra.mxu0 0
    %76 = vmatprep.subr.bf16.mxu0 0
    %77 = vmatpush1.bf16.msra.mxu0 0
    %78 = vmatprep.subr.bf16.mxu0 0
    %79 = vmatpush1.bf16.msra.mxu0 0
    %80 = vmatprep.subr.bf16.mxu0 0
    %81 = vmatpush1.bf16.msra.mxu0 0
    %82 = vmatprep.subr.bf16.mxu0 0
    %83 = vmatpush1.bf16.msra.mxu0 0
    %84 = vmatprep.subr.bf16.mxu0 0
    %85 = vmatpush1.bf16.msra.mxu0 0
    %86 = vmatprep.subr.bf16.mxu0 0
    %87 = vmatpush1.bf16.msra.mxu0 0
    %88 = vmatprep.subr.bf16.mxu0 0
    %89 = vmatpush1.bf16.msra.mxu0 0
    %90 = vmatprep.subr.bf16.mxu0 0
    %91 = vmatpush1.bf16.msra.mxu0 0
    %92 = vmatprep.subr.bf16.mxu0 0
    %93 = vmatpush1.bf16.msra.mxu0 0
    %94 = vmatprep.mubr.bf16.mxu0 0
    %95 = vmatmul.mubr.bf16.gmra.mrb[0].mxu0 %v60
    %v96 = vpop.f32.mrb[0].mxu0
    %v97 = vadd.f32 %v44, %v96
    %v98 = vpop.f32.mrb[0].mxu0
    %v99 = vpop.f32.mrb[0].mxu0
    %v100 = vpop.f32.mrb[0].mxu0
    %101 = vdwg.mxu0
    %v102 = vmax.f32 %v97, 0.0
    %v103 = vpack.c.bf16 %v102, %v102
    %v104 = vld [vmem:[%s3] sm:$0xf]
    %v105 = vld [vmem:[%s3 + $0x4] sm:$0xf]
    %v106 = vld [vmem:[%s3 + $0x8] sm:$0xf]
    %v107 = vld [vmem:[%s3 + $0xc] sm:$0xf]
    %v108 = vld [vmem:[%s3 + $0x10] sm:$0xf]
    %v109 = vld [vmem:[%s3 + $0x14] sm:$0xf]
    %v110 = vld [vmem:[%s3 + $0x18] sm:$0xf]
    %v111 = vld [vmem:[%s3 + $0x1c] sm:$0xf]
    %v112 = vld [vmem:[%s4] sm:$0x1]
    %v114 = vlaneseq
    %v115 = vshrl.u32 %v114, 7
    %v116 = vsub.s32 0, %v115
    %v117 = vrot.slane %v112, %v116
    %v127 = vunpack.c.l.b16 %v104
    %v128 = vunpack.c.l.b16 %v105
    %v129 = vunpack.c.l.b16 %v106
    %v130 = vunpack.c.l.b16 %v107
    %v131 = vunpack.c.l.b16 %v108
    %v132 = vunpack.c.l.b16 %v109
    %v133 = vunpack.c.l.b16 %v110
    %v134 = vunpack.c.l.b16 %v111
    %v135 = vpack.c.b16 %v128, %v127
    %v136 = vpack.c.b16 %v130, %v129
    %v137 = vpack.c.b16 %v132, %v131
    %v138 = vpack.c.b16 %v134, %v133
    %vm143 = vcmask 523264
    %v145 = vsel %vm143, %v103, 0
    %147 = vmatprep.subr.bf16.mxu0 0
    %148 = vmatpush1.bf16.msra.mxu0 %v135
    %149 = vmatprep.subr.bf16.mxu0 0
    %150 = vmatpush1.bf16.msra.mxu0 %v136
    %151 = vmatprep.subr.bf16.mxu0 0
    %152 = vmatpush1.bf16.msra.mxu0 %v137
    %153 = vmatprep.subr.bf16.mxu0 0
    %154 = vmatpush1.bf16.msra.mxu0 %v138
    %155 = vmatprep.subr.bf16.mxu0 0
    %156 = vmatpush1.bf16.msra.mxu0 0
    %157 = vmatprep.subr.bf16.mxu0 0
    %158 = vmatpush1.bf16.msra.mxu0 0
    %159 = vmatprep.subr.bf16.mxu0 0
    %160 = vmatpush1.bf16.msra.mxu0 0
    %161 = vmatprep.subr.bf16.mxu0 0
    %162 = vmatpush1.bf16.msra.mxu0 0
    %163 = vmatprep.subr.bf16.mxu0 0
    %164 = vmatpush1.bf16.msra.mxu0 0
    %165 = vmatprep.subr.bf16.mxu0 0
    %166 = vmatpush1.bf16.msra.mxu0 0
    %167 = vmatprep.subr.bf16.mxu0 0
    %168 = vmatpush1.bf16.msra.mxu0 0
    %169 = vmatprep.subr.bf16.mxu0 0
    %170 = vmatpush1.bf16.msra.mxu0 0
    %171 = vmatprep.subr.bf16.mxu0 0
    %172 = vmatpush1.bf16.msra.mxu0 0
    %173 = vmatprep.subr.bf16.mxu0 0
    %174 = vmatpush1.bf16.msra.mxu0 0
    %175 = vmatprep.subr.bf16.mxu0 0
    %176 = vmatpush1.bf16.msra.mxu0 0
    %177 = vmatprep.subr.bf16.mxu0 0
    %178 = vmatpush1.bf16.msra.mxu0 0
    %179 = vmatprep.mubr.bf16.mxu0 0
    %180 = vmatmul.mubr.bf16.gmra.mrb[0].mxu0 %v145
    %v181 = vpop.f32.mrb[0].mxu0
    %v182 = vadd.f32 %v117, %v181
    %v183 = vpop.f32.mrb[0].mxu0
    %v184 = vpop.f32.mrb[0].mxu0
    %v185 = vpop.f32.mrb[0].mxu0
    %186 = vdwg.mxu0
    %v187 = vmax.f32 %v182, 0.0
    %v188 = vpack.c.bf16 %v187, %v187
    %v189 = vld [vmem:[%s5] sm:$0xf]
    %v190 = vld [vmem:[%s5 + $0x4] sm:$0xf]
    %v191 = vld [vmem:[%s5 + $0x8] sm:$0xf]
    %v192 = vld [vmem:[%s5 + $0xc] sm:$0xf]
    %v193 = vld [vmem:[%s6] sm:$0x1]
    %v194 = vld [vmem:[%s7] sm:$0xf]
    %v195 = vld [vmem:[%s7 + $0x4] sm:$0xf]
    %v196 = vld [vmem:[%s7 + $0x8] sm:$0xf]
    %v197 = vld [vmem:[%s7 + $0xc] sm:$0xf]
    %v198 = vld [vmem:[%s8] sm:$0x1]
    %v200 = vlaneseq
    %v201 = vshrl.u32 %v200, 7
    %v202 = vsub.s32 0, %v201
    %v203 = vrot.slane %v193, %v202
    %v209 = vunpack.c.l.b16 %v189
    %v210 = vunpack.c.l.b16 %v190
    %v211 = vunpack.c.l.b16 %v191
    %v212 = vunpack.c.l.b16 %v192
    %v213 = vpack.c.b16 %v210, %v209
    %v214 = vpack.c.b16 %v212, %v211
    %v218 = vsel %vm58, %v188, 0
    %220 = vmatprep.subr.bf16.mxu0 0
    %221 = vmatpush1.bf16.msra.mxu0 %v213
    %222 = vmatprep.subr.bf16.mxu0 0
    %223 = vmatpush1.bf16.msra.mxu0 %v214
    %224 = vmatprep.subr.bf16.mxu0 0
    %225 = vmatpush1.bf16.msra.mxu0 0
    %226 = vmatprep.subr.bf16.mxu0 0
    %227 = vmatpush1.bf16.msra.mxu0 0
    %228 = vmatprep.subr.bf16.mxu0 0
    %229 = vmatpush1.bf16.msra.mxu0 0
    %230 = vmatprep.subr.bf16.mxu0 0
    %231 = vmatpush1.bf16.msra.mxu0 0
    %232 = vmatprep.subr.bf16.mxu0 0
    %233 = vmatpush1.bf16.msra.mxu0 0
    %234 = vmatprep.subr.bf16.mxu0 0
    %235 = vmatpush1.bf16.msra.mxu0 0
    %236 = vmatprep.subr.bf16.mxu0 0
    %237 = vmatpush1.bf16.msra.mxu0 0
    %238 = vmatprep.subr.bf16.mxu0 0
    %239 = vmatpush1.bf16.msra.mxu0 0
    %240 = vmatprep.subr.bf16.mxu0 0
    %241 = vmatpush1.bf16.msra.mxu0 0
    %242 = vmatprep.subr.bf16.mxu0 0
    %243 = vmatpush1.bf16.msra.mxu0 0
    %244 = vmatprep.subr.bf16.mxu0 0
    %245 = vmatpush1.bf16.msra.mxu0 0
    %246 = vmatprep.subr.bf16.mxu0 0
    %247 = vmatpush1.bf16.msra.mxu0 0
    %248 = vmatprep.subr.bf16.mxu0 0
    %249 = vmatpush1.bf16.msra.mxu0 0
    %250 = vmatprep.subr.bf16.mxu0 0
    %251 = vmatpush1.bf16.msra.mxu0 0
    %252 = vmatprep.mubr.bf16.mxu0 0
    %253 = vmatmul.mubr.bf16.gmra.mrb[0].mxu0 %v218
    %v254 = vpop.f32.mrb[0].mxu0
    %v255 = vadd.f32 %v203, %v254
    %v256 = vpop.f32.mrb[0].mxu0
    %v257 = vpop.f32.mrb[0].mxu0
    %v258 = vpop.f32.mrb[0].mxu0
    %259 = vdwg.mxu0
    %v260 = vmax.f32 %v255, 0.0
    %v261 = vpack.c.bf16 %v260, %v260
    %v263 = vlaneseq
    %v264 = vshrl.u32 %v263, 7
    %v265 = vsub.s32 0, %v264
    %v266 = vrot.slane %v198, %v265
    %v272 = vunpack.c.l.b16 %v194
    %v273 = vunpack.c.l.b16 %v195
    %v274 = vunpack.c.l.b16 %v196
    %v275 = vunpack.c.l.b16 %v197
    %v276 = vpack.c.b16 %v273, %v272
    %v277 = vpack.c.b16 %v275, %v274
    %v281 = vsel %vm58, %v261, 0
    %283 = vmatprep.subr.bf16.mxu0 0
    %284 = vmatpush1.bf16.msra.mxu0 %v276
    %285 = vmatprep.subr.bf16.mxu0 0
    %286 = vmatpush1.bf16.msra.mxu0 %v277
    %287 = vmatprep.subr.bf16.mxu0 0
    %288 = vmatpush1.bf16.msra.mxu0 0
    %289 = vmatprep.subr.bf16.mxu0 0
    %290 = vmatpush1.bf16.msra.mxu0 0
    %291 = vmatprep.subr.bf16.mxu0 0
    %292 = vmatpush1.bf16.msra.mxu0 0
    %293 = vmatprep.subr.bf16.mxu0 0
    %294 = vmatpush1.bf16.msra.mxu0 0
    %295 = vmatprep.subr.bf16.mxu0 0
    %296 = vmatpush1.bf16.msra.mxu0 0
    %297 = vmatprep.subr.bf16.mxu0 0
    %298 = vmatpush1.bf16.msra.mxu0 0
    %299 = vmatprep.subr.bf16.mxu0 0
    %300 = vmatpush1.bf16.msra.mxu0 0
    %301 = vmatprep.subr.bf16.mxu0 0
    %302 = vmatpush1.bf16.msra.mxu0 0
    %303 = vmatprep.subr.bf16.mxu0 0
    %304 = vmatpush1.bf16.msra.mxu0 0
    %305 = vmatprep.subr.bf16.mxu0 0
    %306 = vmatpush1.bf16.msra.mxu0 0
    %307 = vmatprep.subr.bf16.mxu0 0
    %308 = vmatpush1.bf16.msra.mxu0 0
    %309 = vmatprep.subr.bf16.mxu0 0
    %310 = vmatpush1.bf16.msra.mxu0 0
    %311 = vmatprep.subr.bf16.mxu0 0
    %312 = vmatpush1.bf16.msra.mxu0 0
    %313 = vmatprep.subr.bf16.mxu0 0
    %314 = vmatpush1.bf16.msra.mxu0 0
    %315 = vmatprep.mubr.bf16.mxu0 0
    %316 = vmatmul.mubr.bf16.gmra.mrb[0].mxu0 %v281
    %v317 = vpop.f32.mrb[0].mxu0
    %v318 = vadd.f32 %v266, %v317
    %v319 = vpop.f32.mrb[0].mxu0
    %v320 = vpop.f32.mrb[0].mxu0
    %v321 = vpop.f32.mrb[0].mxu0
    %322 = vdwg.mxu0
    %v323 = vlaneseq
    %v324 = vand.u32 %v323, 127
    %vm325 = vcmp.ge.s32.totalorder %v324, 0
    %vm326 = vcmp.lt.s32.totalorder %v324, 5
    %vm327 = vmand %vm325, %vm326
    %v328 = vsel %vm327, 1, 0
    %vm329 = vcmp.eq.s32.totalorder %v328, 1
    %v330 = vsel %vm329, %v318, -inf
    %vm331 = vcmask 64512
    %v332 = vsel %vm331, %v330, -inf
    %333 = vmax.xlane.f32.xlu0 %v332
    %v334 = vpop.xlane.xlu0 %333
    %v335 = vsel %vm329, %v334, 0.0
    %vm336 = vcmp.ge.s32.totalorder %v324, 5
    %vm337 = vcmp.lt.s32.totalorder %v324, 8
    %vm338 = vmand %vm336, %vm337
    %v339 = vsel %vm338, 1, 0
    %vm340 = vcmp.eq.s32.totalorder %v339, 1
    %v341 = vsel %vm340, %v318, -inf
    %v342 = vsel %vm331, %v341, -inf
    %343 = vmax.xlane.f32.xlu0 %v342
    %v344 = vpop.xlane.xlu0 %343
    %v345 = vsel %vm340, %v344, %v335
    %v346 = vsub.f32 %v318, %v345
    %v347 = vmul.f32 %v346, 1.442695
    %v348 = vpow.pop %v347
    %v349 = vsel %vm329, %v348, 0.0
    %v350 = vsel %vm331, %v349, 0.0
    %351 = vadd.xlane.f32.xlu0 %v350
    %v352 = vpop.xlane.xlu0 %351
    %v353 = vsel %vm329, %v352, 1.0
    %v354 = vsel %vm340, %v348, 0.0
    %v355 = vsel %vm331, %v354, 0.0
    %356 = vadd.xlane.f32.xlu0 %v355
    %v357 = vpop.xlane.xlu0 %356
    %v358 = vsel %vm340, %v357, %v353
    %v359 = vrcp.pop %v358
    %v360 = vmul.f32 %v348, %v359
    %v361 = vsub.f32 0.0, %v255
    %v362 = vmul.f32 %v361, 1.442695
    %v363 = vpow.pop %v362
    %v364 = vadd.f32 %v363, 1.0
    %v365 = vrcp.pop %v364
    %367 = vrot.lane.b32.xlu0 %v360, 8
    %v368 = vpop.permute.xlu0 %367
    %371 = vrot.lane.b32.xlu0 %v365, 112
    %v372 = vpop.permute.xlu0 %371
    %v374 = vsel %vm331, %v318, %v368
    %vm375 = vcmask 130048
    %v376 = vsel %vm375, %v374, %v372
    %vm377 = vcmask 146432
    %v378 = vsel %vm377, %v376, 0.0
    %v379 = vpack.c.bf16 %v378, %v378
    %380 = vst [vmem:[#allocation2] sm:$0xf] %v379
    // Predicated region
    $region38: #{tpu_custom_call.1} parent=1 // pred_check
      _
    $region39: #{tpu_custom_call.1} parent=1 // pred_check_branch
      %382 = sbr.rel (0) target = $region41
    $region40: #{tpu_custom_call.1} parent=1 // pred_region
      %s384 = ssub.s32 64, 64
      %385 = vsyncadd [#allocation3], %s384
      %s387 = sshll.u32 [#allocation2], 4
      %s388 = int_to_ptr.vmem [resolvable:$true] %s387
      %390 = dma.vmem_to_hbm [thread:$0]  %s388, 64, %s9, [#allocation3]
    $region41: #{tpu_custom_call.1} parent=1 // pred_fallthru
      _
    // Predicated region
    $region42: #{tpu_custom_call.1} parent=1 // pred_check
      _
    $region43: #{tpu_custom_call.1} parent=1 // pred_check_branch
      %392 = sbr.rel (0) target = $region45
    $region44: #{tpu_custom_call.1} parent=1 // pred_region
      %393 = dma.done [#allocation3], 64
    $region45: #{tpu_custom_call.1} parent=1 // pred_fallthru
      _
    %394 = vsyncpa [#allocation3], 1

</llo_original>
